<compile_context>
chip_gen: v6e
topology: v6e:2x2x1
jax: 0.10.0
libtpu: 0.0.40
codegen_flags: <defaults>
</compile_context>

<pallas_src>
import functools

import jax
import jax.numpy as jnp
from jax import lax
from jax.experimental import pallas as pl
from jax.experimental.pallas import tpu as pltpu


# ---------------------------------------------------------------------------
# Fused kernel: QKV projection + per-head attention + output projection
# ---------------------------------------------------------------------------
def _clip_xattn_kernel(x_ref, wqkv_ref, bqkv_ref, wo_ref, bo_ref, o_ref, *,
                       num_heads, scale, causal):
    """One batch element.

    x_ref    : (1, T, E)  f32   activations
    wqkv_ref : (E, 3E)    bf16  [Wq.T | Wk.T | Wv.T]
    bqkv_ref : (1, 3E)    f32   [bq | bk | bv]
    wo_ref   : (E, E)     bf16  Wo.T
    bo_ref   : (1, E)     f32
    o_ref    : (1, T, E)  f32
    """
    x = x_ref[0]                                                     # (T, E)
    T, E = x.shape
    D = E // num_heads

    # --- fused QKV projection: bf16 operands, f32 accumulation -------------
    qkv = jnp.dot(x.astype(jnp.bfloat16), wqkv_ref[...],
                  preferred_element_type=jnp.float32) + bqkv_ref[...]  # (T, 3E)

    if causal:
        row = lax.broadcasted_iota(jnp.int32, (T, T), 0)
        col = lax.broadcasted_iota(jnp.int32, (T, T), 1)
        keep = col <= row

    # --- per-head attention (static slices; intermediates stay in VMEM) ----
    head_outs = []
    for h in range(num_heads):
        q = (qkv[:, h * D:(h + 1) * D] * scale).astype(jnp.bfloat16)        # (T, D)
        k = qkv[:, E + h * D:E + (h + 1) * D].astype(jnp.bfloat16)          # (T, D)
        v = qkv[:, 2 * E + h * D:2 * E + (h + 1) * D].astype(jnp.bfloat16)  # (T, D)

        # scores: contract head_dim of q and k directly (no explicit k^T)
        s = lax.dot_general(q, k, (((1,), (1,)), ((), ())),
                            preferred_element_type=jnp.float32)             # (T, T)
        if causal:
            # large finite negative: NaN-free even for fully masked rows
            s = jnp.where(keep, s, -1e30)

        m = jnp.max(s, axis=-1, keepdims=True)
        p = jnp.exp(s - m)                                                   # f32, unnormalized
        l = jnp.sum(p, axis=-1, keepdims=True)                               # (T, 1)

        a = jnp.dot(p.astype(jnp.bfloat16), v,
                    preferred_element_type=jnp.float32)                      # (T, D)
        # normalize after p@v: T*D elems instead of T*T, reciprocal on EUP
        a = a * pl.reciprocal(l, approx=True)
        head_outs.append(a)

    concat = jnp.concatenate(head_outs, axis=-1)                             # (T, E)

    # --- output projection: one full-K=E matmul -----------------------------
    out = jnp.dot(concat.astype(jnp.bfloat16), wo_ref[...],
                  preferred_element_type=jnp.float32) + bo_ref[...]
    o_ref[0] = out.astype(o_ref.dtype)


# ---------------------------------------------------------------------------
# Wrappers
# ---------------------------------------------------------------------------
def prepare_params(params):
    """One-time weight packing, hoisted out of the per-call path:
    transpose + concat q/k/v weights, cast matmul operands to bf16."""
    E = params["wq"].shape[0]
    wqkv_t = jnp.concatenate(
        [params["wq"].T, params["wk"].T, params["wv"].T], axis=1
    ).astype(jnp.bfloat16)                                                # (E, 3E)
    bqkv = jnp.concatenate(
        [params["bq"], params["bk"], params["bv"]]
    ).reshape(1, 3 * E).astype(jnp.float32)                               # (1, 3E)
    wo_t = params["wo"].T.astype(jnp.bfloat16)                            # (E, E)
    bo = params["bo"].reshape(1, E).astype(jnp.float32)                   # (1, E)
    return {"wqkv_t": wqkv_t, "bqkv": bqkv, "wo_t": wo_t, "bo": bo}


def clip_xattention_forward(hidden_states, packed, num_heads, causal=False):
    """hidden_states: (B, T, E) f32.  Returns (attn_output, None) like the module."""
    B, T, E = hidden_states.shape
    D = E // num_heads
    scale = D ** (-0.5)  # xformers default softmax scale

    kernel = functools.partial(_clip_xattn_kernel, num_heads=num_heads,
                               scale=scale, causal=causal)

    # TODO(synk): very long sequences (flash-style K/V tiling) or batch==1 on
    # v7x dual-TC (query-row grid axis) would need the projection and the
    # attention split into two kernels; full-(T,T) per batch element is the
    # right trade at CLIP-scale T (~257).
    out = pl.pallas_call(
        kernel,
        out_shape=jax.ShapeDtypeStruct((B, T, E), jnp.float32),
        grid_spec=pltpu.PrefetchScalarGridSpec(
            num_scalar_prefetch=0,
            grid=(B,),
            in_specs=[
                pl.BlockSpec((1, T, E), lambda b: (b, 0, 0)),     # x (per batch)
                pl.BlockSpec((E, 3 * E), lambda b: (0, 0)),       # fused Wqkv^T (resident)
                pl.BlockSpec((1, 3 * E), lambda b: (0, 0)),       # fused bias (resident)
                pl.BlockSpec((E, E), lambda b: (0, 0)),           # Wo^T (resident)
                pl.BlockSpec((1, E), lambda b: (0, 0)),           # bo (resident)
            ],
            out_specs=pl.BlockSpec((1, T, E), lambda b: (b, 0, 0)),
        ),
        compiler_params=pltpu.CompilerParams(
            dimension_semantics=("parallel",)
        ),
    )(hidden_states, packed["wqkv_t"], packed["bqkv"], packed["wo_t"],
      packed["bo"])
    return out, None


# ---------------------------------------------------------------------------
# Deterministic parameter init (synthetic, not a checkpoint load)
# ---------------------------------------------------------------------------
def init_params(key, embed_dim):
    keys = jax.random.split(key, 8)
    s = 0.02
    return {
        "wq": s * jax.random.normal(keys[0], (embed_dim, embed_dim), jnp.float32),
        "bq": s * jax.random.normal(keys[1], (embed_dim,), jnp.float32),
        "wk": s * jax.random.normal(keys[2], (embed_dim, embed_dim), jnp.float32),
        "bk": s * jax.random.normal(keys[3], (embed_dim,), jnp.float32),
        "wv": s * jax.random.normal(keys[4], (embed_dim, embed_dim), jnp.float32),
        "bv": s * jax.random.normal(keys[5], (embed_dim,), jnp.float32),
        "wo": s * jax.random.normal(keys[6], (embed_dim, embed_dim), jnp.float32),
        "bo": s * jax.random.normal(keys[7], (embed_dim,), jnp.float32),
    }


# Pure-JAX f32 reference for correctness check
def reference_forward(hidden_states, params, num_heads, causal=False):
    B, T, E = hidden_states.shape
    D = E // num_heads
    scale = D ** (-0.5)

    def lin(x, w, b):
        return x @ w.T + b

    q = lin(hidden_states, params["wq"], params["bq"])
    k = lin(hidden_states, params["wk"], params["bk"])
    v = lin(hidden_states, params["wv"], params["bv"])

    def to_heads(t):
        return t.reshape(B, T, num_heads, D).transpose(0, 2, 1, 3)

    q, k, v = to_heads(q), to_heads(k), to_heads(v)
    s = jnp.einsum("bhqd,bhkd->bhqk", q, k) * scale
    if causal:
        row = jnp.arange(T)[:, None]
        col = jnp.arange(T)[None, :]
        s = jnp.where(col <= row, s, -jnp.inf)
    p = jax.nn.softmax(s, axis=-1)
    o = jnp.einsum("bhqk,bhkd->bhqd", p, v)
    o = o.transpose(0, 2, 1, 3).reshape(B, T, E)
    return lin(o, params["wo"], params["bo"])


if __name__ == "__main__":
    B, T, E, H = 2, 8, 32, 4  # batch, seq, hidden, heads  (head_dim = 8)

    key = jax.random.PRNGKey(0)
    k_x, k_p = jax.random.split(key)
    hidden_states = jax.random.normal(k_x, (B, T, E), jnp.float32)
    params = init_params(k_p, E)
    packed = prepare_params(params)  # one-time weight packing (not per call)

    fwd_full = jax.jit(functools.partial(clip_xattention_forward,
                                         num_heads=H, causal=False))
    fwd_causal = jax.jit(functools.partial(clip_xattention_forward,
                                           num_heads=H, causal=True))

    out, attn_weights = fwd_full(hidden_states, packed)
    out = jax.block_until_ready(out)
    out_c, _ = fwd_causal(hidden_states, packed)
    out_c = jax.block_until_ready(out_c)

    ref = reference_forward(hidden_states, params, H, causal=False)
    ref_c = reference_forward(hidden_states, params, H, causal=True)

    assert out.shape == (B, T, E)
    assert attn_weights is None
    # bf16 matmul operands + approx reciprocal -> loosened tolerance vs f32 ref
    assert jnp.allclose(out, ref, atol=2e-2, rtol=2e-2), "mismatch vs reference (full)"
    assert jnp.allclose(out_c, ref_c, atol=2e-2, rtol=2e-2), "mismatch vs reference (causal)"

    print("KERNEL_OK")
</pallas_src>

<mosaic_0001>
module attributes {stable_mosaic.version = 11 : i64} {
  func.func @_clip_xattn_kernel(%arg0: i32, %arg1: memref<1x8x32xf32, #tpu.memory_space<vmem>>, %arg2: memref<32x96xbf16, #tpu.memory_space<vmem>>, %arg3: memref<1x96xf32, #tpu.memory_space<vmem>>, %arg4: memref<32x32xbf16, #tpu.memory_space<vmem>>, %arg5: memref<1x32xf32, #tpu.memory_space<vmem>>, %arg6: memref<1x8x32xf32, #tpu.memory_space<vmem>>) attributes {dimension_semantics = [#tpu.dimension_semantics<parallel>], iteration_bounds = array<i64: 2>, scalar_prefetch = 0 : i64, scratch_operands = 0 : i64, tpu.core_type = #tpu.core_type<tc>, window_params = [{transform_indices = @transform_0, window_bounds = array<i64: 1, 8, 32>}, {pipeline_mode = #tpu.pipeline_mode<synchronous>, transform_indices = @transform_1, window_bounds = array<i64: 32, 96>}, {pipeline_mode = #tpu.pipeline_mode<synchronous>, transform_indices = @transform_2, window_bounds = array<i64: 1, 96>}, {pipeline_mode = #tpu.pipeline_mode<synchronous>, transform_indices = @transform_3, window_bounds = array<i64: 32, 32>}, {pipeline_mode = #tpu.pipeline_mode<synchronous>, transform_indices = @transform_4, window_bounds = array<i64: 1, 32>}, {transform_indices = @transform_5, window_bounds = array<i64: 1, 8, 32>}]} {
    %c0 = arith.constant 0 : index
    %c0_0 = arith.constant 0 : index
    %c0_1 = arith.constant 0 : index
    %0 = vector.load %arg1[%c0, %c0_0, %c0_1] : memref<1x8x32xf32, #tpu.memory_space<vmem>>, vector<1x8x32xf32>
    %1 = vector.shape_cast %0 : vector<1x8x32xf32> to vector<8x32xf32>
    %2 = arith.truncf %1 : vector<8x32xf32> to vector<8x32xbf16>
    %c0_2 = arith.constant 0 : index
    %c0_3 = arith.constant 0 : index
    %3 = vector.load %arg2[%c0_2, %c0_3] : memref<32x96xbf16, #tpu.memory_space<vmem>>, vector<32x96xbf16>
    %cst = arith.constant dense<0.000000e+00> : vector<8x96xf32>
    %4 = tpu.matmul %2, %3, %cst {dimension_numbers = #tpu.dot_dimension_numbers<[1], [0], [0], [1], [0, 0, 1, 1], [], []>} : vector<8x32xbf16>, vector<32x96xbf16>, vector<8x96xf32> -> vector<8x96xf32>
    %c0_4 = arith.constant 0 : index
    %c0_5 = arith.constant 0 : index
    %5 = vector.load %arg3[%c0_4, %c0_5] : memref<1x96xf32, #tpu.memory_space<vmem>>, vector<1x96xf32>
    %6 = vector.broadcast %5 : vector<1x96xf32> to vector<8x96xf32>
    %7 = arith.addf %4, %6 : vector<8x96xf32>
    %8 = vector.extract_strided_slice %7 {offsets = [0, 0], sizes = [8, 8], strides = [1, 1]} : vector<8x96xf32> to vector<8x8xf32>
    %cst_6 = arith.constant 0.353553385 : f32
    %9 = vector.broadcast %cst_6 : f32 to vector<8x8xf32>
    %10 = arith.mulf %8, %9 : vector<8x8xf32>
    %11 = arith.truncf %10 : vector<8x8xf32> to vector<8x8xbf16>
    %12 = vector.extract_strided_slice %7 {offsets = [0, 32], sizes = [8, 8], strides = [1, 1]} : vector<8x96xf32> to vector<8x8xf32>
    %13 = arith.truncf %12 : vector<8x8xf32> to vector<8x8xbf16>
    %14 = vector.extract_strided_slice %7 {offsets = [0, 64], sizes = [8, 8], strides = [1, 1]} : vector<8x96xf32> to vector<8x8xf32>
    %15 = arith.truncf %14 : vector<8x8xf32> to vector<8x8xbf16>
    %cst_7 = arith.constant dense<0.000000e+00> : vector<8x8xf32>
    %16 = tpu.matmul %11, %13, %cst_7 {dimension_numbers = #tpu.dot_dimension_numbers<[1], [1], [0], [0], [0, 0, 1, 0], [], []>} : vector<8x8xbf16>, vector<8x8xbf16>, vector<8x8xf32> -> vector<8x8xf32>
    %cst_8 = arith.constant dense<0xFF800000> : vector<8xf32>
    %17 = vector.multi_reduction <maximumf>, %16, %cst_8 [1] : vector<8x8xf32> to vector<8xf32>
    %18 = vector.shape_cast %17 : vector<8xf32> to vector<8x1xf32>
    %19 = vector.broadcast %18 : vector<8x1xf32> to vector<8x8xf32>
    %20 = arith.subf %16, %19 : vector<8x8xf32>
    %21 = math.exp %20 : vector<8x8xf32>
    %cst_9 = arith.constant dense<0.000000e+00> : vector<8xf32>
    %22 = vector.multi_reduction <add>, %21, %cst_9 [1] : vector<8x8xf32> to vector<8xf32>
    %23 = vector.shape_cast %22 : vector<8xf32> to vector<8x1xf32>
    %24 = arith.truncf %21 : vector<8x8xf32> to vector<8x8xbf16>
    %cst_10 = arith.constant dense<0.000000e+00> : vector<8x8xf32>
    %25 = tpu.matmul %24, %15, %cst_10 {dimension_numbers = #tpu.dot_dimension_numbers<[1], [0], [0], [1], [0, 0, 1, 1], [], []>} : vector<8x8xbf16>, vector<8x8xbf16>, vector<8x8xf32> -> vector<8x8xf32>
    %26 = tpu.reciprocal %23 {approx = true} : vector<8x1xf32> -> vector<8x1xf32>
    %27 = vector.broadcast %26 : vector<8x1xf32> to vector<8x8xf32>
    %28 = arith.mulf %25, %27 : vector<8x8xf32>
    %29 = vector.extract_strided_slice %7 {offsets = [0, 8], sizes = [8, 8], strides = [1, 1]} : vector<8x96xf32> to vector<8x8xf32>
    %cst_11 = arith.constant 0.353553385 : f32
    %30 = vector.broadcast %cst_11 : f32 to vector<8x8xf32>
    %31 = arith.mulf %29, %30 : vector<8x8xf32>
    %32 = arith.truncf %31 : vector<8x8xf32> to vector<8x8xbf16>
    %33 = vector.extract_strided_slice %7 {offsets = [0, 40], sizes = [8, 8], strides = [1, 1]} : vector<8x96xf32> to vector<8x8xf32>
    %34 = arith.truncf %33 : vector<8x8xf32> to vector<8x8xbf16>
    %35 = vector.extract_strided_slice %7 {offsets = [0, 72], sizes = [8, 8], strides = [1, 1]} : vector<8x96xf32> to vector<8x8xf32>
    %36 = arith.truncf %35 : vector<8x8xf32> to vector<8x8xbf16>
    %cst_12 = arith.constant dense<0.000000e+00> : vector<8x8xf32>
    %37 = tpu.matmul %32, %34, %cst_12 {dimension_numbers = #tpu.dot_dimension_numbers<[1], [1], [0], [0], [0, 0, 1, 0], [], []>} : vector<8x8xbf16>, vector<8x8xbf16>, vector<8x8xf32> -> vector<8x8xf32>
    %cst_13 = arith.constant dense<0xFF800000> : vector<8xf32>
    %38 = vector.multi_reduction <maximumf>, %37, %cst_13 [1] : vector<8x8xf32> to vector<8xf32>
    %39 = vector.shape_cast %38 : vector<8xf32> to vector<8x1xf32>
    %40 = vector.broadcast %39 : vector<8x1xf32> to vector<8x8xf32>
    %41 = arith.subf %37, %40 : vector<8x8xf32>
    %42 = math.exp %41 : vector<8x8xf32>
    %cst_14 = arith.constant dense<0.000000e+00> : vector<8xf32>
    %43 = vector.multi_reduction <add>, %42, %cst_14 [1] : vector<8x8xf32> to vector<8xf32>
    %44 = vector.shape_cast %43 : vector<8xf32> to vector<8x1xf32>
    %45 = arith.truncf %42 : vector<8x8xf32> to vector<8x8xbf16>
    %cst_15 = arith.constant dense<0.000000e+00> : vector<8x8xf32>
    %46 = tpu.matmul %45, %36, %cst_15 {dimension_numbers = #tpu.dot_dimension_numbers<[1], [0], [0], [1], [0, 0, 1, 1], [], []>} : vector<8x8xbf16>, vector<8x8xbf16>, vector<8x8xf32> -> vector<8x8xf32>
    %47 = tpu.reciprocal %44 {approx = true} : vector<8x1xf32> -> vector<8x1xf32>
    %48 = vector.broadcast %47 : vector<8x1xf32> to vector<8x8xf32>
    %49 = arith.mulf %46, %48 : vector<8x8xf32>
    %50 = vector.extract_strided_slice %7 {offsets = [0, 16], sizes = [8, 8], strides = [1, 1]} : vector<8x96xf32> to vector<8x8xf32>
    %cst_16 = arith.constant 0.353553385 : f32
    %51 = vector.broadcast %cst_16 : f32 to vector<8x8xf32>
    %52 = arith.mulf %50, %51 : vector<8x8xf32>
    %53 = arith.truncf %52 : vector<8x8xf32> to vector<8x8xbf16>
    %54 = vector.extract_strided_slice %7 {offsets = [0, 48], sizes = [8, 8], strides = [1, 1]} : vector<8x96xf32> to vector<8x8xf32>
    %55 = arith.truncf %54 : vector<8x8xf32> to vector<8x8xbf16>
    %56 = vector.extract_strided_slice %7 {offsets = [0, 80], sizes = [8, 8], strides = [1, 1]} : vector<8x96xf32> to vector<8x8xf32>
    %57 = arith.truncf %56 : vector<8x8xf32> to vector<8x8xbf16>
    %cst_17 = arith.constant dense<0.000000e+00> : vector<8x8xf32>
    %58 = tpu.matmul %53, %55, %cst_17 {dimension_numbers = #tpu.dot_dimension_numbers<[1], [1], [0], [0], [0, 0, 1, 0], [], []>} : vector<8x8xbf16>, vector<8x8xbf16>, vector<8x8xf32> -> vector<8x8xf32>
    %cst_18 = arith.constant dense<0xFF800000> : vector<8xf32>
    %59 = vector.multi_reduction <maximumf>, %58, %cst_18 [1] : vector<8x8xf32> to vector<8xf32>
    %60 = vector.shape_cast %59 : vector<8xf32> to vector<8x1xf32>
    %61 = vector.broadcast %60 : vector<8x1xf32> to vector<8x8xf32>
    %62 = arith.subf %58, %61 : vector<8x8xf32>
    %63 = math.exp %62 : vector<8x8xf32>
    %cst_19 = arith.constant dense<0.000000e+00> : vector<8xf32>
    %64 = vector.multi_reduction <add>, %63, %cst_19 [1] : vector<8x8xf32> to vector<8xf32>
    %65 = vector.shape_cast %64 : vector<8xf32> to vector<8x1xf32>
    %66 = arith.truncf %63 : vector<8x8xf32> to vector<8x8xbf16>
    %cst_20 = arith.constant dense<0.000000e+00> : vector<8x8xf32>
    %67 = tpu.matmul %66, %57, %cst_20 {dimension_numbers = #tpu.dot_dimension_numbers<[1], [0], [0], [1], [0, 0, 1, 1], [], []>} : vector<8x8xbf16>, vector<8x8xbf16>, vector<8x8xf32> -> vector<8x8xf32>
    %68 = tpu.reciprocal %65 {approx = true} : vector<8x1xf32> -> vector<8x1xf32>
    %69 = vector.broadcast %68 : vector<8x1xf32> to vector<8x8xf32>
    %70 = arith.mulf %67, %69 : vector<8x8xf32>
    %71 = vector.extract_strided_slice %7 {offsets = [0, 24], sizes = [8, 8], strides = [1, 1]} : vector<8x96xf32> to vector<8x8xf32>
    %cst_21 = arith.constant 0.353553385 : f32
    %72 = vector.broadcast %cst_21 : f32 to vector<8x8xf32>
    %73 = arith.mulf %71, %72 : vector<8x8xf32>
    %74 = arith.truncf %73 : vector<8x8xf32> to vector<8x8xbf16>
    %75 = vector.extract_strided_slice %7 {offsets = [0, 56], sizes = [8, 8], strides = [1, 1]} : vector<8x96xf32> to vector<8x8xf32>
    %76 = arith.truncf %75 : vector<8x8xf32> to vector<8x8xbf16>
    %77 = vector.extract_strided_slice %7 {offsets = [0, 88], sizes = [8, 8], strides = [1, 1]} : vector<8x96xf32> to vector<8x8xf32>
    %78 = arith.truncf %77 : vector<8x8xf32> to vector<8x8xbf16>
    %cst_22 = arith.constant dense<0.000000e+00> : vector<8x8xf32>
    %79 = tpu.matmul %74, %76, %cst_22 {dimension_numbers = #tpu.dot_dimension_numbers<[1], [1], [0], [0], [0, 0, 1, 0], [], []>} : vector<8x8xbf16>, vector<8x8xbf16>, vector<8x8xf32> -> vector<8x8xf32>
    %cst_23 = arith.constant dense<0xFF800000> : vector<8xf32>
    %80 = vector.multi_reduction <maximumf>, %79, %cst_23 [1] : vector<8x8xf32> to vector<8xf32>
    %81 = vector.shape_cast %80 : vector<8xf32> to vector<8x1xf32>
    %82 = vector.broadcast %81 : vector<8x1xf32> to vector<8x8xf32>
    %83 = arith.subf %79, %82 : vector<8x8xf32>
    %84 = math.exp %83 : vector<8x8xf32>
    %cst_24 = arith.constant dense<0.000000e+00> : vector<8xf32>
    %85 = vector.multi_reduction <add>, %84, %cst_24 [1] : vector<8x8xf32> to vector<8xf32>
    %86 = vector.shape_cast %85 : vector<8xf32> to vector<8x1xf32>
    %87 = arith.truncf %84 : vector<8x8xf32> to vector<8x8xbf16>
    %cst_25 = arith.constant dense<0.000000e+00> : vector<8x8xf32>
    %88 = tpu.matmul %87, %78, %cst_25 {dimension_numbers = #tpu.dot_dimension_numbers<[1], [0], [0], [1], [0, 0, 1, 1], [], []>} : vector<8x8xbf16>, vector<8x8xbf16>, vector<8x8xf32> -> vector<8x8xf32>
    %89 = tpu.reciprocal %86 {approx = true} : vector<8x1xf32> -> vector<8x1xf32>
    %90 = vector.broadcast %89 : vector<8x1xf32> to vector<8x8xf32>
    %91 = arith.mulf %88, %90 : vector<8x8xf32>
    %92 = tpu.concatenate %28, %49, %70, %91 in 1 : vector<8x8xf32>, vector<8x8xf32>, vector<8x8xf32>, vector<8x8xf32> -> vector<8x32xf32>
    %93 = arith.truncf %92 : vector<8x32xf32> to vector<8x32xbf16>
    %c0_26 = arith.constant 0 : index
    %c0_27 = arith.constant 0 : index
    %94 = vector.load %arg4[%c0_26, %c0_27] : memref<32x32xbf16, #tpu.memory_space<vmem>>, vector<32x32xbf16>
    %cst_28 = arith.constant dense<0.000000e+00> : vector<8x32xf32>
    %95 = tpu.matmul %93, %94, %cst_28 {dimension_numbers = #tpu.dot_dimension_numbers<[1], [0], [0], [1], [0, 0, 1, 1], [], []>} : vector<8x32xbf16>, vector<32x32xbf16>, vector<8x32xf32> -> vector<8x32xf32>
    %c0_29 = arith.constant 0 : index
    %c0_30 = arith.constant 0 : index
    %96 = vector.load %arg5[%c0_29, %c0_30] : memref<1x32xf32, #tpu.memory_space<vmem>>, vector<1x32xf32>
    %97 = vector.broadcast %96 : vector<1x32xf32> to vector<8x32xf32>
    %98 = arith.addf %95, %97 : vector<8x32xf32>
    %c0_31 = arith.constant 0 : index
    %c0_32 = arith.constant 0 : index
    %c0_33 = arith.constant 0 : index
    %99 = vector.load %arg6[%c0_31, %c0_32, %c0_33] : memref<1x8x32xf32, #tpu.memory_space<vmem>>, vector<1x8x32xf32>
    %100 = vector.shape_cast %99 : vector<1x8x32xf32> to vector<8x32xf32>
    %101 = vector.shape_cast %98 : vector<8x32xf32> to vector<1x8x32xf32>
    tpu.vector_store %arg6[%c0_31, %c0_32, %c0_33], %101 {strides = array<i32>} : memref<1x8x32xf32, #tpu.memory_space<vmem>>, vector<1x8x32xf32>,
    return
  }
  func.func @transform_0(%arg0: i32) -> (i32, i32, i32) {
    %c0_i32 = arith.constant 0 : i32
    %c0_i32_0 = arith.constant 0 : i32
    %c0_i32_1 = arith.constant 0 : i32
    return %arg0, %c0_i32, %c0_i32_0 : i32, i32, i32
  }
  func.func @transform_1(%arg0: i32) -> (i32, i32) {
    %c0_i32 = arith.constant 0 : i32
    %c0_i32_0 = arith.constant 0 : i32
    %c0_i32_1 = arith.constant 0 : i32
    return %c0_i32, %c0_i32_0 : i32, i32
  }
  func.func @transform_2(%arg0: i32) -> (i32, i32) {
    %c0_i32 = arith.constant 0 : i32
    %c0_i32_0 = arith.constant 0 : i32
    %c0_i32_1 = arith.constant 0 : i32
    return %c0_i32, %c0_i32_0 : i32, i32
  }
  func.func @transform_3(%arg0: i32) -> (i32, i32) {
    %c0_i32 = arith.constant 0 : i32
    %c0_i32_0 = arith.constant 0 : i32
    %c0_i32_1 = arith.constant 0 : i32
    return %c0_i32, %c0_i32_0 : i32, i32
  }
  func.func @transform_4(%arg0: i32) -> (i32, i32) {
    %c0_i32 = arith.constant 0 : i32
    %c0_i32_0 = arith.constant 0 : i32
    %c0_i32_1 = arith.constant 0 : i32
    return %c0_i32, %c0_i32_0 : i32, i32
  }
  func.func @transform_5(%arg0: i32) -> (i32, i32, i32) {
    %c0_i32 = arith.constant 0 : i32
    %c0_i32_0 = arith.constant 0 : i32
    %c0_i32_1 = arith.constant 0 : i32
    return %arg0, %c0_i32, %c0_i32_0 : i32, i32, i32
  }
}

</mosaic_0001>

<llo_original>
// kernel: clip_xattention_forward.1
$region0: #{clip_xattention_forward.1}
  #allocation0 [shape = 'u32[]', space=smem, size = 0x4, offset = 0x4, fixed_abs, tag = 'smem constant byte address 0x4 - core index']
  #allocation1 [shape = 'u32[144,128]{1,0:T(1,128)}', space=vmem, size = 0x12000, scoped, tag = 'internal scratch']
  %s0 = inlined_call_operand.hbm [shape: f32[2,8,32], index: 0, kind: input, shape index: {}]
  %s1 = inlined_call_operand.hbm [shape: bf16[32,96], index: 1, kind: input, shape index: {}]
  %s2 = inlined_call_operand.vmem [shape: f32[1,96], index: 2, kind: input, shape index: {}]
  %s3 = inlined_call_operand.hbm [shape: bf16[32,32], index: 3, kind: input, shape index: {}]
  %s4 = inlined_call_operand.hbm [shape: f32[1,32], index: 4, kind: input, shape index: {}]
  %s5 = inlined_call_operand.hbm [shape: f32[2,8,32], index: 5, kind: output, shape index: {}]
  %s6 = sld [smem:[#allocation0]]
  $region69: #{clip_xattention_forward.1} parent=0
    _
  %s8 = ssub.s32 1, %s6
  %s9 = scalar_select 0, %s8, %s6
  $region1: #{clip_xattention_forward.1} parent=0
    #allocation2 [shape = 'u8[8192]{0}', space=vmem, size = 0x2000, scoped, tag = 'input window, operand 0']
    #allocation3 [shape = 's32[2]{0}', space=sflag, size = 0x8, scoped, tag = 'scoped memory for clip_xattention_forward.1']
    #allocation4 [shape = 's32[2]{0}', space=sflag, size = 0x8, scoped, tag = 'scoped memory for clip_xattention_forward.1']
    #allocation5 [shape = 'u8[8192]{0}', space=vmem, size = 0x2000, scoped, tag = 'input window, operand 1, single buffered']
    #allocation6 [shape = 's32[1]{0}', space=sflag, size = 0x4, scoped, tag = 'scoped memory for clip_xattention_forward.1']
    #allocation7 [shape = 'u8[8192]{0}', space=vmem, size = 0x2000, scoped, tag = 'input window, operand 3, single buffered']
    #allocation8 [shape = 'u8[512]{0}', space=vmem, size = 0x400, scoped, tag = 'input window, operand 4, single buffered']
    #allocation9 [shape = 's32[1]{0}', space=sflag, size = 0x4, scoped, tag = 'scoped memory for clip_xattention_forward.1']
    #allocation10 [shape = 'u8[8192]{0}', space=vmem, size = 0x2000, scoped, tag = 'output window, operand 0']
    %10 = vsyncpa [#allocation3], 0
    %s11 = scalar_lea.sflag [#allocation3], 1
    %12 = vsyncpa %s11, 0
    %13 = vsyncpa [#allocation6], 0
    %14 = vsyncpa [#allocation9], 0
    %15 = vsyncpa [#allocation4], 0
    %s16 = scalar_lea.sflag [#allocation4], 1
    %17 = vsyncpa %s16, 0
    loop: start=0, step=1, limit=4
    $region2: #{clip_xattention_forward.1} parent=1 // loop_pre_header
      _
    $region3: #{clip_xattention_forward.1} parent=1 // loop_header
      %s19 = sphi 0, %s23
      %p20 = scmp.ge.s32.totalorder %s19, 4
      %s29 = sphi 0, %s31
      %s32 = sphi 0, %s29
      %s33 = sphi 0, %s32
      %s49 = sphi 0, %s33
      %s53 = sphi 0, %s53
      %s55 = sphi 0, %s53
      %s56 = sphi 0, %s55
      %s70 = sphi 0, %s56
      %s74 = sphi 0, %s74
      %s76 = sphi 0, %s74
      %s77 = sphi 0, %s76
      %s91 = sphi 0, %s77
      %s95 = sphi 0, %s95
      %s97 = sphi 0, %s95
      %s98 = sphi 0, %s97
      %s112 = sphi 0, %s98
      %s116 = sphi 0, %s116
      %s118 = sphi 0, %s116
      %s119 = sphi 0, %s118
      %s133 = sphi 0, %s119
      %s139 = sphi 0, %s141
      %s142 = sphi 0, %s139
      %s143 = sphi 0, %s142
      %s159 = sphi 0, %s143
    $region4: #{clip_xattention_forward.1} parent=1 // loop_header_branch
      %22 = sbr.rel (%p20) target = $region8
    $region5: #{clip_xattention_forward.1} parent=1 // loop_body
      %s24 = ssub.s32 %s19, 1
      %s25 = ssub.s32 %s19, 2
      %s26 = sadd.s32 %s19, 1
      %s27 = ssub.s32 %s19, %s26
      %p28 = scmp.eq.s32.totalorder %s27, 0
      %s30 = sadd.s32 %s29, 1
      %s31 = scalar_select %p28, %s29, %s30
      %p34 = pneg %p28
      %p35 = scmp.eq.s32.totalorder %s19, 1
      %p36 = por %p34, %p35
      %p37 = scmp.ne.s32.totalorder %s29, %s32
      %p38 = scmp.eq.s32.totalorder %s19, 0
      %p39 = por %p37, %p38
      %p40 = scmp.ne.s32.totalorder %s29, %s32
      %p41 = scmp.eq.s32.totalorder %s24, 1
      %p42 = por %p40, %p41
      %p43 = scmp.ne.s32.totalorder %s32, %s33
      %p44 = scmp.eq.s32.totalorder %s24, 0
      %p45 = por %p43, %p44
      %p46 = scmp.ne.s32.totalorder %s32, %s33
      %p47 = scmp.eq.s32.totalorder %s25, 1
      %p48 = por %p46, %p47
      %p50 = scmp.ne.s32.totalorder %s33, %s49
      %p51 = scmp.eq.s32.totalorder %s25, 0
      %p52 = por %p50, %p51
      %s54 = sadd.s32 %s53, 1
      %p57 = scmp.eq.s32.totalorder %s19, 1
      %p58 = scmp.ne.s32.totalorder %s53, %s55
      %p59 = scmp.eq.s32.totalorder %s19, 0
      %p60 = por %p58, %p59
      %p61 = scmp.ne.s32.totalorder %s53, %s55
      %p62 = scmp.eq.s32.totalorder %s24, 1
      %p63 = por %p61, %p62
      %p64 = scmp.ne.s32.totalorder %s55, %s56
      %p65 = scmp.eq.s32.totalorder %s24, 0
      %p66 = por %p64, %p65
      %p67 = scmp.ne.s32.totalorder %s55, %s56
      %p68 = scmp.eq.s32.totalorder %s25, 1
      %p69 = por %p67, %p68
      %p71 = scmp.ne.s32.totalorder %s56, %s70
      %p72 = scmp.eq.s32.totalorder %s25, 0
      %p73 = por %p71, %p72
      %s75 = sadd.s32 %s74, 1
      %p78 = scmp.eq.s32.totalorder %s19, 1
      %p79 = scmp.ne.s32.totalorder %s74, %s76
      %p80 = scmp.eq.s32.totalorder %s19, 0
      %p81 = por %p79, %p80
      %p82 = scmp.ne.s32.totalorder %s74, %s76
      %p83 = scmp.eq.s32.totalorder %s24, 1
      %p84 = por %p82, %p83
      %p85 = scmp.ne.s32.totalorder %s76, %s77
      %p86 = scmp.eq.s32.totalorder %s24, 0
      %p87 = por %p85, %p86
      %p88 = scmp.ne.s32.totalorder %s76, %s77
      %p89 = scmp.eq.s32.totalorder %s25, 1
      %p90 = por %p88, %p89
      %p92 = scmp.ne.s32.totalorder %s77, %s91
      %p93 = scmp.eq.s32.totalorder %s25, 0
      %p94 = por %p92, %p93
      %s96 = sadd.s32 %s95, 1
      %p99 = scmp.eq.s32.totalorder %s19, 1
      %p100 = scmp.ne.s32.totalorder %s95, %s97
      %p101 = scmp.eq.s32.totalorder %s19, 0
      %p102 = por %p100, %p101
      %p103 = scmp.ne.s32.totalorder %s95, %s97
      %p104 = scmp.eq.s32.totalorder %s24, 1
      %p105 = por %p103, %p104
      %p106 = scmp.ne.s32.totalorder %s97, %s98
      %p107 = scmp.eq.s32.totalorder %s24, 0
      %p108 = por %p106, %p107
      %p109 = scmp.ne.s32.totalorder %s97, %s98
      %p110 = scmp.eq.s32.totalorder %s25, 1
      %p111 = por %p109, %p110
      %p113 = scmp.ne.s32.totalorder %s98, %s112
      %p114 = scmp.eq.s32.totalorder %s25, 0
      %p115 = por %p113, %p114
      %s117 = sadd.s32 %s116, 1
      %p120 = scmp.eq.s32.totalorder %s19, 1
      %p121 = scmp.ne.s32.totalorder %s116, %s118
      %p122 = scmp.eq.s32.totalorder %s19, 0
      %p123 = por %p121, %p122
      %p124 = scmp.ne.s32.totalorder %s116, %s118
      %p125 = scmp.eq.s32.totalorder %s24, 1
      %p126 = por %p124, %p125
      %p127 = scmp.ne.s32.totalorder %s118, %s119
      %p128 = scmp.eq.s32.totalorder %s24, 0
      %p129 = por %p127, %p128
      %p130 = scmp.ne.s32.totalorder %s118, %s119
      %p131 = scmp.eq.s32.totalorder %s25, 1
      %p132 = por %p130, %p131
      %p134 = scmp.ne.s32.totalorder %s119, %s133
      %p135 = scmp.eq.s32.totalorder %s25, 0
      %p136 = por %p134, %p135
      %s137 = ssub.s32 %s19, %s26
      %p138 = scmp.eq.s32.totalorder %s137, 0
      %s140 = sadd.s32 %s139, 1
      %s141 = scalar_select %p138, %s139, %s140
      %p144 = pneg %p138
      %p145 = scmp.eq.s32.totalorder %s19, 1
      %p146 = por %p144, %p145
      %p147 = scmp.ne.s32.totalorder %s139, %s142
      %p148 = scmp.eq.s32.totalorder %s19, 0
      %p149 = por %p147, %p148
      %p150 = scmp.ne.s32.totalorder %s139, %s142
      %p151 = scmp.eq.s32.totalorder %s24, 1
      %p152 = por %p150, %p151
      %p153 = scmp.ne.s32.totalorder %s142, %s143
      %p154 = scmp.eq.s32.totalorder %s24, 0
      %p155 = por %p153, %p154
      %p156 = scmp.ne.s32.totalorder %s142, %s143
      %p157 = scmp.eq.s32.totalorder %s25, 1
      %p158 = por %p156, %p157
      %p160 = scmp.ne.s32.totalorder %s143, %s159
      %p161 = scmp.eq.s32.totalorder %s25, 0
      %p162 = por %p160, %p161
      %p163 = scmp.le.s32.totalorder 1, %s19
      %p164 = scmp.lt.s32.totalorder %s19, 3
      %p165 = pnand %p163, %p164
      %p166 = pneg %p165
      // Predicated region
      $region9: #{clip_xattention_forward.1} parent=5 // pred_check
        _
      $region10: #{clip_xattention_forward.1} parent=5 // pred_check_branch
        %168 = sbr.rel (%p165) target = $region12
      $region11: #{clip_xattention_forward.1} parent=5 // pred_region
        %s169 = ssub.s32 %s19, 1
        // Predicated region
        $region13: #{clip_xattention_forward.1} parent=11 // pred_check
          %p170 = pneg %p66
        $region14: #{clip_xattention_forward.1} parent=11 // pred_check_branch
          %172 = sbr.rel (%p170) target = $region16
        $region15: #{clip_xattention_forward.1} parent=11 // pred_region
          %s174 = ssub.s32 256, 256
          %175 = vsyncadd [#allocation6], %s174
          %s176 = sshll.u32 [#allocation5], 4
          %s177 = int_to_ptr.vmem [resolvable:$true] %s176
          %182 = dma.hbm_to_vmem [thread:$0]  %s1, 256, %s177, [#allocation6], 64, 64, 4
        $region16: #{clip_xattention_forward.1} parent=11 // pred_fallthru
          _
        // Predicated region
        $region17: #{clip_xattention_forward.1} parent=11 // pred_check
          %p183 = pneg %p87
        $region18: #{clip_xattention_forward.1} parent=11 // pred_check_branch
          %185 = sbr.rel (%p183) target = $region20
        $region19: #{clip_xattention_forward.1} parent=11 // pred_region
          _
        $region20: #{clip_xattention_forward.1} parent=11 // pred_fallthru
          _
        // Predicated region
        $region21: #{clip_xattention_forward.1} parent=11 // pred_check
          %p186 = pneg %p108
        $region22: #{clip_xattention_forward.1} parent=11 // pred_check_branch
          %188 = sbr.rel (%p186) target = $region24
        $region23: #{clip_xattention_forward.1} parent=11 // pred_region
          %s190 = ssub.s32 256, 256
          %191 = vsyncadd [#allocation6], %s190
          %s192 = sshll.u32 [#allocation7], 4
          %s193 = int_to_ptr.vmem [resolvable:$true] %s192
          %198 = dma.hbm_to_vmem [thread:$0]  %s3, 256, %s193, [#allocation6], 64, 64, 4
        $region24: #{clip_xattention_forward.1} parent=11 // pred_fallthru
          _
        // Predicated region
        $region25: #{clip_xattention_forward.1} parent=11 // pred_check
          %p199 = pneg %p129
        $region26: #{clip_xattention_forward.1} parent=11 // pred_check_branch
          %201 = sbr.rel (%p199) target = $region28
        $region27: #{clip_xattention_forward.1} parent=11 // pred_region
          %s203 = ssub.s32 16, 16
          %204 = vsyncadd [#allocation9], %s203
          %s206 = sshll.u32 [#allocation8], 4
          %s207 = int_to_ptr.vmem [resolvable:$true] %s206
          %209 = dma.hbm_to_vmem [thread:$0]  %s4, 16, %s207, [#allocation9]
        $region28: #{clip_xattention_forward.1} parent=11 // pred_fallthru
          _
      $region12: #{clip_xattention_forward.1} parent=5 // pred_fallthru
        _
      %p210 = scmp.lt.s32.totalorder %s19, 2
      // Predicated region
      $region29: #{clip_xattention_forward.1} parent=5 // pred_check
        %p211 = pneg %p210
      $region30: #{clip_xattention_forward.1} parent=5 // pred_check_branch
        %213 = sbr.rel (%p211) target = $region32
      $region31: #{clip_xattention_forward.1} parent=5 // pred_region
        // Predicated region
        $region33: #{clip_xattention_forward.1} parent=31 // pred_check
          %p214 = pneg %p39
        $region34: #{clip_xattention_forward.1} parent=31 // pred_check_branch
          %216 = sbr.rel (%p214) target = $region36
        $region35: #{clip_xattention_forward.1} parent=31 // pred_region
          %s217 = sand.u32 %s29, 1
          %s218 = scalar_lea.sflag [#allocation3], %s217
          %s219 = sand.u32 %s29, 1
          %s220 = smul.addr %s219, 8
          %s221 = scalar_lea.vmem [#allocation2], %s220
          %s223 = ssub.s32 128, 128
          %224 = vsyncadd %s218, %s223
          %s225 = smul.addr %s19, 128
          %s226 = scalar_lea.hbm %s0, %s225
          %s228 = sshll.u32 %s221, 4
          %s229 = int_to_ptr.vmem [resolvable:$true] %s228
          %231 = dma.hbm_to_vmem [thread:$0]  %s226, 128, %s229, %s218
        $region36: #{clip_xattention_forward.1} parent=31 // pred_fallthru
          _
      $region32: #{clip_xattention_forward.1} parent=5 // pred_fallthru
        _
      %p232 = scmp.le.s32.totalorder 1, %s19
      %p233 = scmp.lt.s32.totalorder %s19, 3
      %p234 = pnand %p232, %p233
      %p235 = pneg %p234
      // Predicated region
      $region37: #{clip_xattention_forward.1} parent=5 // pred_check
        _
      $region38: #{clip_xattention_forward.1} parent=5 // pred_check_branch
        %237 = sbr.rel (%p234) target = $region40
      $region39: #{clip_xattention_forward.1} parent=5 // pred_region
        %s238 = ssub.s32 %s19, 1
        %s239 = sand.u32 %s32, 1
        %s240 = scalar_lea.sflag [#allocation3], %s239
        %s241 = sand.u32 %s32, 1
        %s242 = smul.addr %s241, 8
        %s243 = scalar_lea.vmem [#allocation2], %s242
        // Predicated region
        $region41: #{clip_xattention_forward.1} parent=39 // pred_check
          %p244 = pneg %p45
        $region42: #{clip_xattention_forward.1} parent=39 // pred_check_branch
          %246 = sbr.rel (%p244) target = $region44
        $region43: #{clip_xattention_forward.1} parent=39 // pred_region
          %247 = dma.done %s240, 128
        $region44: #{clip_xattention_forward.1} parent=39 // pred_fallthru
          _
        // Predicated region
        $region45: #{clip_xattention_forward.1} parent=39 // pred_check
          %p248 = pneg %p66
        $region46: #{clip_xattention_forward.1} parent=39 // pred_check_branch
          %250 = sbr.rel (%p248) target = $region48
        $region47: #{clip_xattention_forward.1} parent=39 // pred_region
          %251 = dma.done [#allocation6], 256
        $region48: #{clip_xattention_forward.1} parent=39 // pred_fallthru
          _
        // Predicated region
        $region49: #{clip_xattention_forward.1} parent=39 // pred_check
          %p252 = pneg %p108
        $region50: #{clip_xattention_forward.1} parent=39 // pred_check_branch
          %254 = sbr.rel (%p252) target = $region52
        $region51: #{clip_xattention_forward.1} parent=39 // pred_region
          %255 = dma.done [#allocation6], 256
        $region52: #{clip_xattention_forward.1} parent=39 // pred_fallthru
          _
        // Predicated region
        $region53: #{clip_xattention_forward.1} parent=39 // pred_check
          %p256 = pneg %p129
        $region54: #{clip_xattention_forward.1} parent=39 // pred_check_branch
          %258 = sbr.rel (%p256) target = $region56
        $region55: #{clip_xattention_forward.1} parent=39 // pred_region
          %259 = dma.done [#allocation9], 16
        $region56: #{clip_xattention_forward.1} parent=39 // pred_fallthru
          _
        %s260 = sand.u32 %s32, 1
        %s261 = scalar_lea.sflag [#allocation3], %s260
        %s262 = sand.u32 %s32, 1
        %s263 = smul.addr %s262, 8
        %s264 = scalar_lea.vmem [#allocation2], %s263
        %p265 = pneg %p45
        %p266 = pneg %p42
        %p267 = pneg %p66
        %p268 = pneg %p63
        %p269 = pneg %p87
        %p270 = pneg %p84
        %p271 = pneg %p108
        %p272 = pneg %p105
        %p273 = pneg %p129
        %p274 = pneg %p126
        %p275 = pneg %p155
        %p276 = pneg %p152
        %s277 = sand.u32 %s142, 1
        %s278 = scalar_lea.sflag [#allocation4], %s277
        %s279 = sand.u32 %s142, 1
        %s280 = smul.addr %s279, 8
        %s281 = scalar_lea.vmem [#allocation10], %s280
        %v283 = vld [vmem:[%s243] sm:$0xff]
        %v284 = vpack.c.bf16 %v283, %v283
        %v285 = vld [vmem:[#allocation5] sm:$0xf]
        %v286 = vld [vmem:[#allocation5 + $0x4] sm:$0xf]
        %v287 = vld [vmem:[#allocation5 + $0x8] sm:$0xf]
        %v288 = vld [vmem:[#allocation5 + $0xc] sm:$0xf]
        %v289 = vld [vmem:[%s2] sm:$0x1]
        %v291 = vlaneseq
        %v292 = vshrl.u32 %v291, 7
        %v293 = vsub.s32 0, %v292
        %v294 = vrot.slane %v289, %v293
        %v300 = vunpack.c.l.b16 %v285
        %v301 = vunpack.c.l.b16 %v286
        %v302 = vunpack.c.l.b16 %v287
        %v303 = vunpack.c.l.b16 %v288
        %v304 = vpack.c.b16 %v301, %v300
        %v305 = vpack.c.b16 %v303, %v302
        %vm308 = vcmask 261120
        %v310 = vsel %vm308, %v284, 0
        %312 = vmatprep.subr.bf16.mxu0 0
        %313 = vmatpush1.bf16.msra.mxu0 0
        %314 = vmatprep.subr.bf16.mxu0 0
        %315 = vmatpush1.bf16.msra.mxu0 0
        %316 = vmatprep.subr.bf16.mxu0 0
        %317 = vmatpush1.bf16.msra.mxu0 0
        %318 = vmatprep.subr.bf16.mxu0 0
        %319 = vmatpush1.bf16.msra.mxu0 0
        %320 = vmatprep.subr.bf16.mxu0 0
        %321 = vmatpush1.bf16.msra.mxu0 0
        %322 = vmatprep.subr.bf16.mxu0 0
        %323 = vmatpush1.bf16.msra.mxu0 0
        %324 = vmatprep.subr.bf16.mxu0 0
        %325 = vmatpush1.bf16.msra.mxu0 %v305
        %326 = vmatprep.subr.bf16.mxu0 0
        %327 = vmatpush1.bf16.msra.mxu0 %v304
        %328 = vmatprep.subr.bf16.mxu0 0
        %329 = vmatpush2.bf16.msra.mxu0 0
        %330 = vmatprep.subr.bf16.mxu0 0
        %331 = vmatpush2.bf16.msra.mxu0 0
        %332 = vmatprep.subr.bf16.mxu0 0
        %333 = vmatpush2.bf16.msra.mxu0 0
        %334 = vmatprep.subr.bf16.mxu0 0
        %335 = vmatpush2.bf16.msra.mxu0 0
        %336 = vmatprep.subr.bf16.mxu0 0
        %337 = vmatpush2.bf16.msra.mxu0 0
        %338 = vmatprep.subr.bf16.mxu0 0
        %339 = vmatpush2.bf16.msra.mxu0 0
        %340 = vmatprep.subr.bf16.mxu0 0
        %341 = vmatpush2.bf16.msra.mxu0 0
        %342 = vmatprep.subr.bf16.mxu0 0
        %343 = vmatpush2.bf16.msra.mxu0 0
        %344 = vmatprep.mubr.bf16.mxu0 0
        %345 = vmatmul.mubr.bf16.gmra.mxu0 %v310
        %v346 = vpop.f32.mrf.mxu0
        %v347 = vadd.f32 %v294, %v346
        %v348 = vpop.f32.mrf.mxu0
        %v349 = vpop.f32.mrf.mxu0
        %v350 = vpop.f32.mrf.mxu0
        %351 = vdwg.mxu0
        %v352 = vmul.f32 %v347, 0.35355338
        %v353 = vpack.c.bf16 %v352, %v352
        %v354 = vpack.c.bf16 %v347, %v347
        %356 = vrot.lane.b32.xlu0 %v354, 96
        %v357 = vpop.permute.xlu0 %356
        %vm358 = vcmask 64512
        %v360 = vsel %vm358, %v353, 0
        %v363 = vsel %vm358, %v357, 0
        %365 = vmatprep.subr.bf16.mxu0 0
        %366 = vmatpush1.bf16.xpose.msra.mxu0 0
        %367 = vmatprep.subr.bf16.mxu0 0
        %368 = vmatpush1.bf16.xpose.msra.mxu0 0
        %369 = vmatprep.subr.bf16.mxu0 0
        %370 = vmatpush1.bf16.xpose.msra.mxu0 0
        %371 = vmatprep.subr.bf16.mxu0 0
        %372 = vmatpush1.bf16.xpose.msra.mxu0 0
        %373 = vmatprep.subr.bf16.mxu0 0
        %374 = vmatpush1.bf16.xpose.msra.mxu0 0
        %375 = vmatprep.subr.bf16.mxu0 0
        %376 = vmatpush1.bf16.xpose.msra.mxu0 0
        %377 = vmatprep.subr.bf16.mxu0 0
        %378 = vmatpush1.bf16.xpose.msra.mxu0 0
        %379 = vmatprep.subr.bf16.mxu0 0
        %380 = vmatpush1.bf16.xpose.msra.mxu0 %v363
        %381 = vmatprep.subr.bf16.mxu0 0
        %382 = vmatpush2.bf16.xpose.msra.mxu0 0
        %383 = vmatprep.subr.bf16.mxu0 0
        %384 = vmatpush2.bf16.xpose.msra.mxu0 0
        %385 = vmatprep.subr.bf16.mxu0 0
        %386 = vmatpush2.bf16.xpose.msra.mxu0 0
        %387 = vmatprep.subr.bf16.mxu0 0
        %388 = vmatpush2.bf16.xpose.msra.mxu0 0
        %389 = vmatprep.subr.bf16.mxu0 0
        %390 = vmatpush2.bf16.xpose.msra.mxu0 0
        %391 = vmatprep.subr.bf16.mxu0 0
        %392 = vmatpush2.bf16.xpose.msra.mxu0 0
        %393 = vmatprep.subr.bf16.mxu0 0
        %394 = vmatpush2.bf16.xpose.msra.mxu0 0
        %395 = vmatprep.subr.bf16.mxu0 0
        %396 = vmatpush2.bf16.xpose.msra.mxu0 0
        %397 = vmatprep.mubr.bf16.mxu0 0
        %398 = vmatmul.mubr.bf16.gmra.mxu0 %v360
        %v399 = vpop.f32.mrf.mxu0
        %v400 = vadd.f32 0.0, %v399
        %v401 = vpop.f32.mrf.mxu0
        %v402 = vpop.f32.mrf.mxu0
        %v403 = vpop.f32.mrf.mxu0
        %404 = vdwg.mxu0
        %v405 = vsel %vm358, %v400, -inf
        %406 = vmax.xlane.f32.xlu0 %v405
        %v407 = vpop.xlane.xlu0 %406
        %v408 = vsub.f32 %v400, %v407
        %v409 = vmul.f32 %v408, 1.442695
        %v410 = vpow.pop %v409
        %v411 = vsel %vm358, %v410, 0.0
        %412 = vadd.xlane.f32.xlu0 %v411
        %v413 = vpop.xlane.xlu0 %412
        %v414 = vpack.c.bf16 %v410, %v410
        %415 = vrot.lane.b32.xlu0 %v354, 64
        %v416 = vpop.permute.xlu0 %415
        %v418 = vsel %vm358, %v414, 0
        %vm420 = vcmask 1043456
        %v422 = vsel %vm420, %v416, 0
        %424 = vmatprep.subr.bf16.mxu0 0
        %425 = vmatpush1.bf16.msra.mxu0 0
        %426 = vmatprep.subr.bf16.mxu0 0
        %427 = vmatpush1.bf16.msra.mxu0 0
        %428 = vmatprep.subr.bf16.mxu0 0
        %429 = vmatpush1.bf16.msra.mxu0 0
        %430 = vmatprep.subr.bf16.mxu0 0
        %431 = vmatpush1.bf16.msra.mxu0 0
        %432 = vmatprep.subr.bf16.mxu0 0
        %433 = vmatpush1.bf16.msra.mxu0 0
        %434 = vmatprep.subr.bf16.mxu0 0
        %435 = vmatpush1.bf16.msra.mxu0 0
        %436 = vmatprep.subr.bf16.mxu0 0
        %437 = vmatpush1.bf16.msra.mxu0 0
        %438 = vmatprep.subr.bf16.mxu0 0
        %439 = vmatpush1.bf16.msra.mxu0 %v422
        %440 = vmatprep.subr.bf16.mxu0 0
        %441 = vmatpush2.bf16.msra.mxu0 0
        %442 = vmatprep.subr.bf16.mxu0 0
        %443 = vmatpush2.bf16.msra.mxu0 0
        %444 = vmatprep.subr.bf16.mxu0 0
        %445 = vmatpush2.bf16.msra.mxu0 0
        %446 = vmatprep.subr.bf16.mxu0 0
        %447 = vmatpush2.bf16.msra.mxu0 0
        %448 = vmatprep.subr.bf16.mxu0 0
        %449 = vmatpush2.bf16.msra.mxu0 0
        %450 = vmatprep.subr.bf16.mxu0 0
        %451 = vmatpush2.bf16.msra.mxu0 0
        %452 = vmatprep.subr.bf16.mxu0 0
        %453 = vmatpush2.bf16.msra.mxu0 0
        %454 = vmatprep.subr.bf16.mxu0 0
        %455 = vmatpush2.bf16.msra.mxu0 0
        %456 = vmatprep.mubr.bf16.mxu0 0
        %457 = vmatmul.mubr.bf16.gmra.mxu0 %v418
        %v458 = vpop.f32.mrf.mxu0
        %v459 = vadd.f32 0.0, %v458
        %v460 = vpop.f32.mrf.mxu0
        %v461 = vpop.f32.mrf.mxu0
        %v462 = vpop.f32.mrf.mxu0
        %463 = vdwg.mxu0
        %v464 = vrcp.pop %v413
        %v465 = vmul.f32 %v459, %v464
        %467 = vrot.lane.b32.xlu0 %v353, 120
        %v468 = vpop.permute.xlu0 %467
        %469 = vrot.lane.b32.xlu0 %v354, 88
        %v470 = vpop.permute.xlu0 %469
        %v472 = vsel %vm358, %v468, 0
        %v475 = vsel %vm358, %v470, 0
        %477 = vmatprep.subr.bf16.mxu0 0
        %478 = vmatpush1.bf16.xpose.msra.mxu0 0
        %479 = vmatprep.subr.bf16.mxu0 0
        %480 = vmatpush1.bf16.xpose.msra.mxu0 0
        %481 = vmatprep.subr.bf16.mxu0 0
        %482 = vmatpush1.bf16.xpose.msra.mxu0 0
        %483 = vmatprep.subr.bf16.mxu0 0
        %484 = vmatpush1.bf16.xpose.msra.mxu0 0
        %485 = vmatprep.subr.bf16.mxu0 0
        %486 = vmatpush1.bf16.xpose.msra.mxu0 0
        %487 = vmatprep.subr.bf16.mxu0 0
        %488 = vmatpush1.bf16.xpose.msra.mxu0 0
        %489 = vmatprep.subr.bf16.mxu0 0
        %490 = vmatpush1.bf16.xpose.msra.mxu0 0
        %491 = vmatprep.subr.bf16.mxu0 0
        %492 = vmatpush1.bf16.xpose.msra.mxu0 %v475
        %493 = vmatprep.subr.bf16.mxu0 0
        %494 = vmatpush2.bf16.xpose.msra.mxu0 0
        %495 = vmatprep.subr.bf16.mxu0 0
        %496 = vmatpush2.bf16.xpose.msra.mxu0 0
        %497 = vmatprep.subr.bf16.mxu0 0
        %498 = vmatpush2.bf16.xpose.msra.mxu0 0
        %499 = vmatprep.subr.bf16.mxu0 0
        %500 = vmatpush2.bf16.xpose.msra.mxu0 0
        %501 = vmatprep.subr.bf16.mxu0 0
        %502 = vmatpush2.bf16.xpose.msra.mxu0 0
        %503 = vmatprep.subr.bf16.mxu0 0
        %504 = vmatpush2.bf16.xpose.msra.mxu0 0
        %505 = vmatprep.subr.bf16.mxu0 0
        %506 = vmatpush2.bf16.xpose.msra.mxu0 0
        %507 = vmatprep.subr.bf16.mxu0 0
        %508 = vmatpush2.bf16.xpose.msra.mxu0 0
        %509 = vmatprep.mubr.bf16.mxu0 0
        %510 = vmatmul.mubr.bf16.gmra.mxu0 %v472
        %v511 = vpop.f32.mrf.mxu0
        %v512 = vadd.f32 0.0, %v511
        %v513 = vpop.f32.mrf.mxu0
        %v514 = vpop.f32.mrf.mxu0
        %v515 = vpop.f32.mrf.mxu0
        %516 = vdwg.mxu0
        %v517 = vsel %vm358, %v512, -inf
        %518 = vmax.xlane.f32.xlu0 %v517
        %v519 = vpop.xlane.xlu0 %518
        %v520 = vsub.f32 %v512, %v519
        %v521 = vmul.f32 %v520, 1.442695
        %v522 = vpow.pop %v521
        %v523 = vsel %vm358, %v522, 0.0
        %524 = vadd.xlane.f32.xlu0 %v523
        %v525 = vpop.xlane.xlu0 %524
        %v526 = vpack.c.bf16 %v522, %v522
        %527 = vrot.lane.b32.xlu0 %v354, 56
        %v528 = vpop.permute.xlu0 %527
        %v530 = vsel %vm358, %v526, 0
        %v533 = vsel %vm420, %v528, 0
        %535 = vmatprep.subr.bf16.mxu0 0
        %536 = vmatpush1.bf16.msra.mxu0 0
        %537 = vmatprep.subr.bf16.mxu0 0
        %538 = vmatpush1.bf16.msra.mxu0 0
        %539 = vmatprep.subr.bf16.mxu0 0
        %540 = vmatpush1.bf16.msra.mxu0 0
        %541 = vmatprep.subr.bf16.mxu0 0
        %542 = vmatpush1.bf16.msra.mxu0 0
        %543 = vmatprep.subr.bf16.mxu0 0
        %544 = vmatpush1.bf16.msra.mxu0 0
        %545 = vmatprep.subr.bf16.mxu0 0
        %546 = vmatpush1.bf16.msra.mxu0 0
        %547 = vmatprep.subr.bf16.mxu0 0
        %548 = vmatpush1.bf16.msra.mxu0 0
        %549 = vmatprep.subr.bf16.mxu0 0
        %550 = vmatpush1.bf16.msra.mxu0 %v533
        %551 = vmatprep.subr.bf16.mxu0 0
        %552 = vmatpush2.bf16.msra.mxu0 0
        %553 = vmatprep.subr.bf16.mxu0 0
        %554 = vmatpush2.bf16.msra.mxu0 0
        %555 = vmatprep.subr.bf16.mxu0 0
        %556 = vmatpush2.bf16.msra.mxu0 0
        %557 = vmatprep.subr.bf16.mxu0 0
        %558 = vmatpush2.bf16.msra.mxu0 0
        %559 = vmatprep.subr.bf16.mxu0 0
        %560 = vmatpush2.bf16.msra.mxu0 0
        %561 = vmatprep.subr.bf16.mxu0 0
        %562 = vmatpush2.bf16.msra.mxu0 0
        %563 = vmatprep.subr.bf16.mxu0 0
        %564 = vmatpush2.bf16.msra.mxu0 0
        %565 = vmatprep.subr.bf16.mxu0 0
        %566 = vmatpush2.bf16.msra.mxu0 0
        %567 = vmatprep.mubr.bf16.mxu0 0
        %568 = vmatmul.mubr.bf16.gmra.mxu0 %v530
        %v569 = vpop.f32.mrf.mxu0
        %v570 = vadd.f32 0.0, %v569
        %v571 = vpop.f32.mrf.mxu0
        %v572 = vpop.f32.mrf.mxu0
        %v573 = vpop.f32.mrf.mxu0
        %574 = vdwg.mxu0
        %v575 = vrcp.pop %v525
        %v576 = vmul.f32 %v570, %v575
        %577 = vrot.lane.b32.xlu0 %v353, 112
        %v578 = vpop.permute.xlu0 %577
        %579 = vrot.lane.b32.xlu0 %v354, 80
        %v580 = vpop.permute.xlu0 %579
        %v582 = vsel %vm358, %v578, 0
        %v585 = vsel %vm358, %v580, 0
        %587 = vmatprep.subr.bf16.mxu0 0
        %588 = vmatpush1.bf16.xpose.msra.mxu0 0
        %589 = vmatprep.subr.bf16.mxu0 0
        %590 = vmatpush1.bf16.xpose.msra.mxu0 0
        %591 = vmatprep.subr.bf16.mxu0 0
        %592 = vmatpush1.bf16.xpose.msra.mxu0 0
        %593 = vmatprep.subr.bf16.mxu0 0
        %594 = vmatpush1.bf16.xpose.msra.mxu0 0
        %595 = vmatprep.subr.bf16.mxu0 0
        %596 = vmatpush1.bf16.xpose.msra.mxu0 0
        %597 = vmatprep.subr.bf16.mxu0 0
        %598 = vmatpush1.bf16.xpose.msra.mxu0 0
        %599 = vmatprep.subr.bf16.mxu0 0
        %600 = vmatpush1.bf16.xpose.msra.mxu0 0
        %601 = vmatprep.subr.bf16.mxu0 0
        %602 = vmatpush1.bf16.xpose.msra.mxu0 %v585
        %603 = vmatprep.subr.bf16.mxu0 0
        %604 = vmatpush2.bf16.xpose.msra.mxu0 0
        %605 = vmatprep.subr.bf16.mxu0 0
        %606 = vmatpush2.bf16.xpose.msra.mxu0 0
        %607 = vmatprep.subr.bf16.mxu0 0
        %608 = vmatpush2.bf16.xpose.msra.mxu0 0
        %609 = vmatprep.subr.bf16.mxu0 0
        %610 = vmatpush2.bf16.xpose.msra.mxu0 0
        %611 = vmatprep.subr.bf16.mxu0 0
        %612 = vmatpush2.bf16.xpose.msra.mxu0 0
        %613 = vmatprep.subr.bf16.mxu0 0
        %614 = vmatpush2.bf16.xpose.msra.mxu0 0
        %615 = vmatprep.subr.bf16.mxu0 0
        %616 = vmatpush2.bf16.xpose.msra.mxu0 0
        %617 = vmatprep.subr.bf16.mxu0 0
        %618 = vmatpush2.bf16.xpose.msra.mxu0 0
        %619 = vmatprep.mubr.bf16.mxu0 0
        %620 = vmatmul.mubr.bf16.gmra.mxu0 %v582
        %v621 = vpop.f32.mrf.mxu0
        %v622 = vadd.f32 0.0, %v621
        %v623 = vpop.f32.mrf.mxu0
        %v624 = vpop.f32.mrf.mxu0
        %v625 = vpop.f32.mrf.mxu0
        %626 = vdwg.mxu0
        %v627 = vsel %vm358, %v622, -inf
        %628 = vmax.xlane.f32.xlu0 %v627
        %v629 = vpop.xlane.xlu0 %628
        %v630 = vsub.f32 %v622, %v629
        %v631 = vmul.f32 %v630, 1.442695
        %v632 = vpow.pop %v631
        %v633 = vsel %vm358, %v632, 0.0
        %634 = vadd.xlane.f32.xlu0 %v633
        %v635 = vpop.xlane.xlu0 %634
        %v636 = vpack.c.bf16 %v632, %v632
        %637 = vrot.lane.b32.xlu0 %v354, 48
        %v638 = vpop.permute.xlu0 %637
        %v640 = vsel %vm358, %v636, 0
        %v643 = vsel %vm420, %v638, 0
        %645 = vmatprep.subr.bf16.mxu0 0
        %646 = vmatpush1.bf16.msra.mxu0 0
        %647 = vmatprep.subr.bf16.mxu0 0
        %648 = vmatpush1.bf16.msra.mxu0 0
        %649 = vmatprep.subr.bf16.mxu0 0
        %650 = vmatpush1.bf16.msra.mxu0 0
        %651 = vmatprep.subr.bf16.mxu0 0
        %652 = vmatpush1.bf16.msra.mxu0 0
        %653 = vmatprep.subr.bf16.mxu0 0
        %654 = vmatpush1.bf16.msra.mxu0 0
        %655 = vmatprep.subr.bf16.mxu0 0
        %656 = vmatpush1.bf16.msra.mxu0 0
        %657 = vmatprep.subr.bf16.mxu0 0
        %658 = vmatpush1.bf16.msra.mxu0 0
        %659 = vmatprep.subr.bf16.mxu0 0
        %660 = vmatpush1.bf16.msra.mxu0 %v643
        %661 = vmatprep.subr.bf16.mxu0 0
        %662 = vmatpush2.bf16.msra.mxu0 0
        %663 = vmatprep.subr.bf16.mxu0 0
        %664 = vmatpush2.bf16.msra.mxu0 0
        %665 = vmatprep.subr.bf16.mxu0 0
        %666 = vmatpush2.bf16.msra.mxu0 0
        %667 = vmatprep.subr.bf16.mxu0 0
        %668 = vmatpush2.bf16.msra.mxu0 0
        %669 = vmatprep.subr.bf16.mxu0 0
        %670 = vmatpush2.bf16.msra.mxu0 0
        %671 = vmatprep.subr.bf16.mxu0 0
        %672 = vmatpush2.bf16.msra.mxu0 0
        %673 = vmatprep.subr.bf16.mxu0 0
        %674 = vmatpush2.bf16.msra.mxu0 0
        %675 = vmatprep.subr.bf16.mxu0 0
        %676 = vmatpush2.bf16.msra.mxu0 0
        %677 = vmatprep.mubr.bf16.mxu0 0
        %678 = vmatmul.mubr.bf16.gmra.mxu0 %v640
        %v679 = vpop.f32.mrf.mxu0
        %v680 = vadd.f32 0.0, %v679
        %v681 = vpop.f32.mrf.mxu0
        %v682 = vpop.f32.mrf.mxu0
        %v683 = vpop.f32.mrf.mxu0
        %684 = vdwg.mxu0
        %v685 = vrcp.pop %v635
        %v686 = vmul.f32 %v680, %v685
        %687 = vrot.lane.b32.xlu0 %v353, 104
        %v688 = vpop.permute.xlu0 %687
        %689 = vrot.lane.b32.xlu0 %v354, 72
        %v690 = vpop.permute.xlu0 %689
        %v692 = vsel %vm358, %v688, 0
        %v695 = vsel %vm358, %v690, 0
        %697 = vmatprep.subr.bf16.mxu0 0
        %698 = vmatpush1.bf16.xpose.msra.mxu0 0
        %699 = vmatprep.subr.bf16.mxu0 0
        %700 = vmatpush1.bf16.xpose.msra.mxu0 0
        %701 = vmatprep.subr.bf16.mxu0 0
        %702 = vmatpush1.bf16.xpose.msra.mxu0 0
        %703 = vmatprep.subr.bf16.mxu0 0
        %704 = vmatpush1.bf16.xpose.msra.mxu0 0
        %705 = vmatprep.subr.bf16.mxu0 0
        %706 = vmatpush1.bf16.xpose.msra.mxu0 0
        %707 = vmatprep.subr.bf16.mxu0 0
        %708 = vmatpush1.bf16.xpose.msra.mxu0 0
        %709 = vmatprep.subr.bf16.mxu0 0
        %710 = vmatpush1.bf16.xpose.msra.mxu0 0
        %711 = vmatprep.subr.bf16.mxu0 0
        %712 = vmatpush1.bf16.xpose.msra.mxu0 %v695
        %713 = vmatprep.subr.bf16.mxu0 0
        %714 = vmatpush2.bf16.xpose.msra.mxu0 0
        %715 = vmatprep.subr.bf16.mxu0 0
        %716 = vmatpush2.bf16.xpose.msra.mxu0 0
        %717 = vmatprep.subr.bf16.mxu0 0
        %718 = vmatpush2.bf16.xpose.msra.mxu0 0
        %719 = vmatprep.subr.bf16.mxu0 0
        %720 = vmatpush2.bf16.xpose.msra.mxu0 0
        %721 = vmatprep.subr.bf16.mxu0 0
        %722 = vmatpush2.bf16.xpose.msra.mxu0 0
        %723 = vmatprep.subr.bf16.mxu0 0
        %724 = vmatpush2.bf16.xpose.msra.mxu0 0
        %725 = vmatprep.subr.bf16.mxu0 0
        %726 = vmatpush2.bf16.xpose.msra.mxu0 0
        %727 = vmatprep.subr.bf16.mxu0 0
        %728 = vmatpush2.bf16.xpose.msra.mxu0 0
        %729 = vmatprep.mubr.bf16.mxu0 0
        %730 = vmatmul.mubr.bf16.gmra.mxu0 %v692
        %v731 = vpop.f32.mrf.mxu0
        %v732 = vadd.f32 0.0, %v731
        %v733 = vpop.f32.mrf.mxu0
        %v734 = vpop.f32.mrf.mxu0
        %v735 = vpop.f32.mrf.mxu0
        %736 = vdwg.mxu0
        %v737 = vsel %vm358, %v732, -inf
        %738 = vmax.xlane.f32.xlu0 %v737
        %v739 = vpop.xlane.xlu0 %738
        %v740 = vsub.f32 %v732, %v739
        %v741 = vmul.f32 %v740, 1.442695
        %v742 = vpow.pop %v741
        %v743 = vsel %vm358, %v742, 0.0
        %744 = vadd.xlane.f32.xlu0 %v743
        %v745 = vpop.xlane.xlu0 %744
        %v746 = vpack.c.bf16 %v742, %v742
        %747 = vrot.lane.b32.xlu0 %v354, 40
        %v748 = vpop.permute.xlu0 %747
        %v750 = vsel %vm358, %v746, 0
        %v753 = vsel %vm420, %v748, 0
        %755 = vmatprep.subr.bf16.mxu0 0
        %756 = vmatpush1.bf16.msra.mxu0 0
        %757 = vmatprep.subr.bf16.mxu0 0
        %758 = vmatpush1.bf16.msra.mxu0 0
        %759 = vmatprep.subr.bf16.mxu0 0
        %760 = vmatpush1.bf16.msra.mxu0 0
        %761 = vmatprep.subr.bf16.mxu0 0
        %762 = vmatpush1.bf16.msra.mxu0 0
        %763 = vmatprep.subr.bf16.mxu0 0
        %764 = vmatpush1.bf16.msra.mxu0 0
        %765 = vmatprep.subr.bf16.mxu0 0
        %766 = vmatpush1.bf16.msra.mxu0 0
        %767 = vmatprep.subr.bf16.mxu0 0
        %768 = vmatpush1.bf16.msra.mxu0 0
        %769 = vmatprep.subr.bf16.mxu0 0
        %770 = vmatpush1.bf16.msra.mxu0 %v753
        %771 = vmatprep.subr.bf16.mxu0 0
        %772 = vmatpush2.bf16.msra.mxu0 0
        %773 = vmatprep.subr.bf16.mxu0 0
        %774 = vmatpush2.bf16.msra.mxu0 0
        %775 = vmatprep.subr.bf16.mxu0 0
        %776 = vmatpush2.bf16.msra.mxu0 0
        %777 = vmatprep.subr.bf16.mxu0 0
        %778 = vmatpush2.bf16.msra.mxu0 0
        %779 = vmatprep.subr.bf16.mxu0 0
        %780 = vmatpush2.bf16.msra.mxu0 0
        %781 = vmatprep.subr.bf16.mxu0 0
        %782 = vmatpush2.bf16.msra.mxu0 0
        %783 = vmatprep.subr.bf16.mxu0 0
        %784 = vmatpush2.bf16.msra.mxu0 0
        %785 = vmatprep.subr.bf16.mxu0 0
        %786 = vmatpush2.bf16.msra.mxu0 0
        %787 = vmatprep.mubr.bf16.mxu0 0
        %788 = vmatmul.mubr.bf16.gmra.mxu0 %v750
        %v789 = vpop.f32.mrf.mxu0
        %v790 = vadd.f32 0.0, %v789
        %v791 = vpop.f32.mrf.mxu0
        %v792 = vpop.f32.mrf.mxu0
        %v793 = vpop.f32.mrf.mxu0
        %794 = vdwg.mxu0
        %v795 = vrcp.pop %v745
        %v796 = vmul.f32 %v790, %v795
        %798 = vrot.lane.b32.xlu0 %v576, 8
        %v799 = vpop.permute.xlu0 %798
        %802 = vrot.lane.b32.xlu0 %v686, 16
        %v803 = vpop.permute.xlu0 %802
        %806 = vrot.lane.b32.xlu0 %v796, 24
        %v807 = vpop.permute.xlu0 %806
        %v809 = vsel %vm358, %v465, %v799
        %vm810 = vcmask 130048
        %v811 = vsel %vm810, %v809, %v803
        %vm812 = vcmask 195584
        %v813 = vsel %vm812, %v811, %v807
        %v814 = vpack.c.bf16 %v813, %v813
        %v815 = vld [vmem:[#allocation7] sm:$0xf]
        %v816 = vld [vmem:[#allocation7 + $0x4] sm:$0xf]
        %v817 = vld [vmem:[#allocation7 + $0x8] sm:$0xf]
        %v818 = vld [vmem:[#allocation7 + $0xc] sm:$0xf]
        %v819 = vld [vmem:[#allocation8] sm:$0x1]
        %v821 = vlaneseq
        %v822 = vshrl.u32 %v821, 7
        %v823 = vsub.s32 0, %v822
        %v824 = vrot.slane %v819, %v823
        %v830 = vunpack.c.l.b16 %v815
        %v831 = vunpack.c.l.b16 %v816
        %v832 = vunpack.c.l.b16 %v817
        %v833 = vunpack.c.l.b16 %v818
        %v834 = vpack.c.b16 %v831, %v830
        %v835 = vpack.c.b16 %v833, %v832
        %v839 = vsel %vm308, %v814, 0
        %841 = vmatprep.subr.bf16.mxu0 0
        %842 = vmatpush1.bf16.msra.mxu0 0
        %843 = vmatprep.subr.bf16.mxu0 0
        %844 = vmatpush1.bf16.msra.mxu0 0
        %845 = vmatprep.subr.bf16.mxu0 0
        %846 = vmatpush1.bf16.msra.mxu0 0
        %847 = vmatprep.subr.bf16.mxu0 0
        %848 = vmatpush1.bf16.msra.mxu0 0
        %849 = vmatprep.subr.bf16.mxu0 0
        %850 = vmatpush1.bf16.msra.mxu0 0
        %851 = vmatprep.subr.bf16.mxu0 0
        %852 = vmatpush1.bf16.msra.mxu0 0
        %853 = vmatprep.subr.bf16.mxu0 0
        %854 = vmatpush1.bf16.msra.mxu0 %v835
        %855 = vmatprep.subr.bf16.mxu0 0
        %856 = vmatpush1.bf16.msra.mxu0 %v834
        %857 = vmatprep.subr.bf16.mxu0 0
        %858 = vmatpush2.bf16.msra.mxu0 0
        %859 = vmatprep.subr.bf16.mxu0 0
        %860 = vmatpush2.bf16.msra.mxu0 0
        %861 = vmatprep.subr.bf16.mxu0 0
        %862 = vmatpush2.bf16.msra.mxu0 0
        %863 = vmatprep.subr.bf16.mxu0 0
        %864 = vmatpush2.bf16.msra.mxu0 0
        %865 = vmatprep.subr.bf16.mxu0 0
        %866 = vmatpush2.bf16.msra.mxu0 0
        %867 = vmatprep.subr.bf16.mxu0 0
        %868 = vmatpush2.bf16.msra.mxu0 0
        %869 = vmatprep.subr.bf16.mxu0 0
        %870 = vmatpush2.bf16.msra.mxu0 0
        %871 = vmatprep.subr.bf16.mxu0 0
        %872 = vmatpush2.bf16.msra.mxu0 0
        %873 = vmatprep.mubr.bf16.mxu0 0
        %874 = vmatmul.mubr.bf16.gmra.mxu0 %v839
        %v875 = vpop.f32.mrf.mxu0
        %v876 = vadd.f32 %v824, %v875
        %v877 = vpop.f32.mrf.mxu0
        %v878 = vpop.f32.mrf.mxu0
        %v879 = vpop.f32.mrf.mxu0
        %880 = vdwg.mxu0
        %881 = vst.msk [vmem:[%s281] sm:$0xff] %vm308, %v876
        %s882 = sand.u32 %s142, 1
        %s883 = scalar_lea.sflag [#allocation4], %s882
        %s884 = sand.u32 %s142, 1
        %s885 = smul.addr %s884, 8
        %s886 = scalar_lea.vmem [#allocation10], %s885
        // Predicated region
        $region57: #{clip_xattention_forward.1} parent=39 // pred_check
          %p887 = pneg %p152
        $region58: #{clip_xattention_forward.1} parent=39 // pred_check_branch
          %889 = sbr.rel (%p887) target = $region60
        $region59: #{clip_xattention_forward.1} parent=39 // pred_region
          %s891 = ssub.s32 128, 128
          %892 = vsyncadd %s883, %s891
          %s893 = smul.addr %s24, 128
          %s894 = scalar_lea.hbm %s5, %s893
          %s896 = sshll.u32 %s886, 4
          %s897 = int_to_ptr.vmem [resolvable:$true] %s896
          %899 = dma.vmem_to_hbm [thread:$0]  %s897, 128, %s894, %s883
        $region60: #{clip_xattention_forward.1} parent=39 // pred_fallthru
          _
      $region40: #{clip_xattention_forward.1} parent=5 // pred_fallthru
        _
      %p900 = scmp.le.s32.totalorder 2, %s19
      // Predicated region
      $region61: #{clip_xattention_forward.1} parent=5 // pred_check
        %p901 = pneg %p900
      $region62: #{clip_xattention_forward.1} parent=5 // pred_check_branch
        %903 = sbr.rel (%p901) target = $region64
      $region63: #{clip_xattention_forward.1} parent=5 // pred_region
        %s904 = ssub.s32 %s19, 2
        // Predicated region
        $region65: #{clip_xattention_forward.1} parent=63 // pred_check
          %p905 = pneg %p158
        $region66: #{clip_xattention_forward.1} parent=63 // pred_check_branch
          %907 = sbr.rel (%p905) target = $region68
        $region67: #{clip_xattention_forward.1} parent=63 // pred_region
          %s908 = sand.u32 %s143, 1
          %s909 = scalar_lea.sflag [#allocation4], %s908
          %s910 = sand.u32 %s143, 1
          %s911 = smul.addr %s910, 8
          %s912 = scalar_lea.vmem [#allocation10], %s911
          %913 = dma.done %s909, 128
        $region68: #{clip_xattention_forward.1} parent=63 // pred_fallthru
          _
      $region64: #{clip_xattention_forward.1} parent=5 // pred_fallthru
        _
    $region6: #{clip_xattention_forward.1} parent=1 // loop_footer
      %s23 = sadd.s32 1, %s19
    $region7: #{clip_xattention_forward.1} parent=1 // loop_footer_branch
      %18 = sbr.rel target = $region3
    $region8: #{clip_xattention_forward.1} parent=1 // loop_exit
      _
    %914 = vsyncpa [#allocation3], 1
    %s915 = scalar_lea.sflag [#allocation3], 1
    %916 = vsyncpa %s915, 1
    %917 = vsyncpa [#allocation6], 1
    %918 = vsyncpa [#allocation9], 1
    %919 = vsyncpa [#allocation4], 1
    %s920 = scalar_lea.sflag [#allocation4], 1
    %921 = vsyncpa %s920, 1

</llo_original>
